<compile_context>
chip_gen: v5e
topology: v5e:2x2
jax: 0.10.0
libtpu: 0.0.40
codegen_flags: <defaults>
</compile_context>

<pallas_src>
import jax
import jax.numpy as jnp
from jax.experimental import pallas as pl
from jax.experimental.pallas import tpu as pltpu

LN_EPS = 1e-5  # PyTorch nn.LayerNorm default


def _round_up(n, m):
    return ((n + m - 1) // m) * m


def _cdiv(a, b):
    return (a + b - 1) // b


# ---------------------------------------------------------------------------
# Fused kernel
# ---------------------------------------------------------------------------
def _make_fused_mlp_kernel(hidden_true_dims):
    """x -> [Linear->LN->ReLU]* -> Linear, everything resident in VMEM.

    hidden_true_dims: true (unpadded) output width of each hidden layer, used
    as the LayerNorm divisor (padded lanes contribute zero to the sums).
    Kernel args: x_ref, (w_ref, bgb_ref) per hidden layer, w_last, b_last, o_ref.
    bgb_ref rows: [0]=bias, [1]=gamma, [2]=beta (all f32). Weights are bf16.
    """
    nh = len(hidden_true_dims)

    def kernel(*refs):
        x_ref = refs[0]
        o_ref = refs[-1]
        h = x_ref[...].astype(jnp.float32)
        idx = 1
        for li in range(nh):
            w_ref, bgb_ref = refs[idx], refs[idx + 1]
            idx += 2
            # bf16 MXU inputs, f32 accumulation.
            y = jnp.dot(h.astype(jnp.bfloat16), w_ref[...],
                        preferred_element_type=jnp.float32)
            y = y + bgb_ref[0:1, :]
            inv_d = 1.0 / float(hidden_true_dims[li])
            mean = jnp.sum(y, axis=-1, keepdims=True) * inv_d
            mean_sq = jnp.sum(y * y, axis=-1, keepdims=True) * inv_d
            var = jnp.maximum(mean_sq - mean * mean, 0.0)  # cancellation guard
            yn = (y - mean) * jax.lax.rsqrt(var + LN_EPS)
            yn = yn * bgb_ref[1:2, :] + bgb_ref[2:3, :]    # padded lanes -> 0
            h = jnp.maximum(yn, 0.0)
            # Dropout(p) in eval mode is identity -> nothing to do.
        w_ref, b_ref = refs[idx], refs[idx + 1]
        y = jnp.dot(h.astype(jnp.bfloat16), w_ref[...],
                    preferred_element_type=jnp.float32) + b_ref[...]
        o_ref[...] = y.astype(o_ref.dtype)

    return kernel


# ---------------------------------------------------------------------------
# Parameter preparation (done once, outside the kernel)
# ---------------------------------------------------------------------------
def prepare_params(params):
    """Pads weights to 128-lane multiples (bf16); merges b/gamma/beta -> (3,N) f32."""
    prepared = []
    for layer in params:
        k, n = layer["w"].shape
        k_pad, n_pad = _round_up(k, 128), _round_up(n, 128)
        w = jnp.zeros((k_pad, n_pad), jnp.bfloat16)
        w = w.at[:k, :n].set(layer["w"].astype(jnp.bfloat16))
        entry = {"w": w, "true_in": k, "true_out": n}
        if "gamma" in layer:  # hidden layer: Linear + LayerNorm
            bgb = jnp.zeros((3, n_pad), jnp.float32)
            bgb = bgb.at[0, :n].set(layer["b"][0])
            bgb = bgb.at[1, :n].set(layer["gamma"][0])
            bgb = bgb.at[2, :n].set(layer["beta"][0])
            entry["bgb"] = bgb
            entry["hidden"] = True
        else:                 # final classifier layer
            b = jnp.zeros((1, n_pad), jnp.float32).at[0, :n].set(layer["b"][0])
            entry["b"] = b
            entry["hidden"] = False
        prepared.append(entry)
    return prepared


# ---------------------------------------------------------------------------
# Batch tiling
# ---------------------------------------------------------------------------
def _choose_batch_tiling(B, tb_max=512):
    """Pick (tb, B_pad) with tb | B_pad, multiple of 8 (128 when large),
    minimal padding waste, and >=2 grid steps when tiles are MXU-sized (v7x)."""
    B8 = _round_up(B, 8)
    n_tiles = _cdiv(B8, tb_max)
    tb = _round_up(_cdiv(B8, n_tiles), 8)
    if tb >= 128:                       # keep big tiles MXU-aligned
        tb = _round_up(tb, 128)
    # v7x megacore: avoid grid=(1,) when a split still gives full-size tiles.
    if n_tiles == 1 and tb >= 512 and (tb // 2) % 8 == 0:
        n_tiles, tb = 2, tb // 2
    return tb, n_tiles * tb


# ---------------------------------------------------------------------------
# Forward
# ---------------------------------------------------------------------------
def flexible_classifier_forward(x, prepared, tb_max=512):
    """x: [B, in_features] f32; prepared: output of prepare_params()."""
    B, F = x.shape
    F_pad = prepared[0]["w"].shape[0]
    num_classes = prepared[-1]["true_out"]
    C_pad = prepared[-1]["w"].shape[1]

    tb, B_pad = _choose_batch_tiling(B, tb_max)
    x_pad = jnp.zeros((B_pad, F_pad), jnp.float32).at[:B, :F].set(x)

    hidden_layers = prepared[:-1]
    last = prepared[-1]
    kernel = _make_fused_mlp_kernel([l["true_out"] for l in hidden_layers])

    one_buf = pl.Buffered(1)  # constant-index inputs: DMA'd once, 1 buffer
    in_specs = [pl.BlockSpec((tb, F_pad), lambda i: (i, 0))]
    args = [x_pad]
    for l in hidden_layers:
        in_specs.append(pl.BlockSpec(l["w"].shape, lambda i: (0, 0),
                                     pipeline_mode=one_buf))
        in_specs.append(pl.BlockSpec(l["bgb"].shape, lambda i: (0, 0),
                                     pipeline_mode=one_buf))
        args += [l["w"], l["bgb"]]
    in_specs.append(pl.BlockSpec(last["w"].shape, lambda i: (0, 0),
                                 pipeline_mode=one_buf))
    in_specs.append(pl.BlockSpec(last["b"].shape, lambda i: (0, 0),
                                 pipeline_mode=one_buf))
    args += [last["w"], last["b"]]

    # --- VMEM budget (resident weights single-buffered + streamed tiles) ---
    resident_bytes = 0
    for l in prepared:
        resident_bytes += l["w"].size * l["w"].dtype.itemsize
        aux = l["bgb"] if l["hidden"] else l["b"]
        resident_bytes += aux.size * aux.dtype.itemsize
    max_n_pad = max(l["w"].shape[1] for l in prepared)
    stream_bytes = 2 * tb * F_pad * 4 + 2 * tb * C_pad * 4
    temp_bytes = 3 * tb * max_n_pad * 4
    vmem_limit = int(1.2 * (resident_bytes + stream_bytes + temp_bytes))
    vmem_limit = min(max(vmem_limit, 4 << 20), 64 << 20)

    # --- Cost estimate (advisory) ---
    flops = 2 * B_pad * sum(l["w"].shape[0] * l["w"].shape[1] for l in prepared)
    bytes_accessed = (x_pad.size * 4 + resident_bytes + B_pad * C_pad * 4)
    cost = pl.CostEstimate(flops=flops,
                           transcendentals=B_pad * len(hidden_layers),
                           bytes_accessed=bytes_accessed)

    out = pl.pallas_call(
        kernel,
        out_shape=jax.ShapeDtypeStruct((B_pad, C_pad), jnp.float32),
        grid=(B_pad // tb,),
        in_specs=in_specs,
        out_specs=pl.BlockSpec((tb, C_pad), lambda i: (i, 0)),
        compiler_params=pltpu.CompilerParams(
            dimension_semantics=("parallel",),
            vmem_limit_bytes=vmem_limit),
        cost_estimate=cost,
    )(*args)
    return out[:B, :num_classes]


# ---------------------------------------------------------------------------
# Synthetic params + pure-JAX reference
# ---------------------------------------------------------------------------
def init_params(key, in_features, num_classes, hidden_dims):
    """Deterministic synthetic parameters (PyTorch-like uniform init)."""
    params = []
    prev = in_features
    dims = list(hidden_dims) + [num_classes]
    for li, dim in enumerate(dims):
        key, kw, kb = jax.random.split(key, 3)
        bound = 1.0 / jnp.sqrt(prev)
        w = jax.random.uniform(kw, (prev, dim), jnp.float32, -bound, bound)
        b = jax.random.uniform(kb, (1, dim), jnp.float32, -bound, bound)
        layer = {"w": w, "b": b}
        if li < len(hidden_dims):
            layer["gamma"] = jnp.ones((1, dim), jnp.float32)
            layer["beta"] = jnp.zeros((1, dim), jnp.float32)
        params.append(layer)
        prev = dim
    return params


def reference_forward(x, params, matmul_dtype=jnp.float32):
    """Pure-JAX reference (PyTorch eval-mode semantics). matmul_dtype=bf16
    mirrors the kernel's bf16-in / f32-accumulate MXU matmuls."""
    h = x
    for layer in params[:-1]:
        y = jnp.dot(h.astype(matmul_dtype), layer["w"].astype(matmul_dtype),
                    preferred_element_type=jnp.float32) + layer["b"]
        mean = jnp.mean(y, axis=-1, keepdims=True)
        var = jnp.mean(jnp.square(y - mean), axis=-1, keepdims=True)
        y = (y - mean) * jax.lax.rsqrt(var + LN_EPS)
        y = y * layer["gamma"] + layer["beta"]
        h = jnp.maximum(y, 0.0)
    last = params[-1]
    return jnp.dot(h.astype(matmul_dtype), last["w"].astype(matmul_dtype),
                   preferred_element_type=jnp.float32) + last["b"]


if __name__ == "__main__":
    # MLP with two hidden layers.
    batch = 8
    in_features = 32
    hidden_dims = [64, 32]
    num_classes = 10

    key = jax.random.PRNGKey(0)
    key, kx = jax.random.split(key)
    x = jax.random.normal(kx, (batch, in_features), jnp.float32)
    params = init_params(key, in_features, num_classes, hidden_dims)
    prepared = prepare_params(params)

    out = flexible_classifier_forward(x, prepared)
    out = jax.block_until_ready(out)
    assert out.shape == (batch, num_classes)
    ref_bf16 = reference_forward(x, params, matmul_dtype=jnp.bfloat16)
    ref_f32 = reference_forward(x, params, matmul_dtype=jnp.float32)
    assert jnp.max(jnp.abs(out - ref_bf16)) < 2e-3, "mismatch vs bf16 reference (MLP)"
    assert jnp.max(jnp.abs(out - ref_f32)) < 5e-2, "mismatch vs f32 reference (MLP)"

    # Degenerate case: no hidden layers -> pure linear classifier.
    params_lin = init_params(jax.random.PRNGKey(1), in_features, num_classes, [])
    out_lin = flexible_classifier_forward(x, prepare_params(params_lin))
    out_lin = jax.block_until_ready(out_lin)
    ref_lin = reference_forward(x, params_lin, matmul_dtype=jnp.bfloat16)
    assert jnp.max(jnp.abs(out_lin - ref_lin)) < 2e-3, "mismatch vs reference (linear)"

    print("KERNEL_OK")
</pallas_src>

<mosaic_0001>
module attributes {stable_mosaic.version = 11 : i64} {
  func.func @kernel(%arg0: i32, %arg1: memref<8x128xf32, #tpu.memory_space<vmem>>, %arg2: memref<128x128xbf16, #tpu.memory_space<vmem>>, %arg3: memref<3x128xf32, #tpu.memory_space<vmem>>, %arg4: memref<128x128xbf16, #tpu.memory_space<vmem>>, %arg5: memref<3x128xf32, #tpu.memory_space<vmem>>, %arg6: memref<128x128xbf16, #tpu.memory_space<vmem>>, %arg7: memref<1x128xf32, #tpu.memory_space<vmem>>, %arg8: memref<8x128xf32, #tpu.memory_space<vmem>>) attributes {dimension_semantics = [#tpu.dimension_semantics<parallel>], iteration_bounds = array<i64: 1>, scalar_prefetch = 0 : i64, scratch_operands = 0 : i64, tpu.core_type = #tpu.core_type<tc>, window_params = [{transform_indices = @transform_0, window_bounds = array<i64: 8, 128>}, {pipeline_mode = #tpu.pipeline_mode<synchronous>, transform_indices = @transform_1, window_bounds = array<i64: 128, 128>}, {pipeline_mode = #tpu.pipeline_mode<synchronous>, transform_indices = @transform_2, window_bounds = array<i64: 3, 128>}, {pipeline_mode = #tpu.pipeline_mode<synchronous>, transform_indices = @transform_3, window_bounds = array<i64: 128, 128>}, {pipeline_mode = #tpu.pipeline_mode<synchronous>, transform_indices = @transform_4, window_bounds = array<i64: 3, 128>}, {pipeline_mode = #tpu.pipeline_mode<synchronous>, transform_indices = @transform_5, window_bounds = array<i64: 128, 128>}, {pipeline_mode = #tpu.pipeline_mode<synchronous>, transform_indices = @transform_6, window_bounds = array<i64: 1, 128>}, {transform_indices = @transform_7, window_bounds = array<i64: 8, 128>}]} {
    %c0 = arith.constant 0 : index
    %c0_0 = arith.constant 0 : index
    %0 = vector.load %arg1[%c0, %c0_0] : memref<8x128xf32, #tpu.memory_space<vmem>>, vector<8x128xf32>
    %1 = arith.truncf %0 : vector<8x128xf32> to vector<8x128xbf16>
    %c0_1 = arith.constant 0 : index
    %c0_2 = arith.constant 0 : index
    %2 = vector.load %arg2[%c0_1, %c0_2] : memref<128x128xbf16, #tpu.memory_space<vmem>>, vector<128x128xbf16>
    %cst = arith.constant dense<0.000000e+00> : vector<8x128xf32>
    %3 = tpu.matmul %1, %2, %cst {dimension_numbers = #tpu.dot_dimension_numbers<[1], [0], [0], [1], [0, 0, 1, 1], [], []>} : vector<8x128xbf16>, vector<128x128xbf16>, vector<8x128xf32> -> vector<8x128xf32>
    %c0_3 = arith.constant 0 : index
    %c0_4 = arith.constant 0 : index
    %4 = vector.load %arg3[%c0_3, %c0_4] : memref<3x128xf32, #tpu.memory_space<vmem>>, vector<1x128xf32>
    %5 = vector.broadcast %4 : vector<1x128xf32> to vector<8x128xf32>
    %6 = arith.addf %3, %5 : vector<8x128xf32>
    %cst_5 = arith.constant dense<0.000000e+00> : vector<8xf32>
    %7 = vector.multi_reduction <add>, %6, %cst_5 [1] : vector<8x128xf32> to vector<8xf32>
    %8 = vector.shape_cast %7 : vector<8xf32> to vector<8x1xf32>
    %cst_6 = arith.constant 1.562500e-02 : f32
    %9 = vector.broadcast %cst_6 : f32 to vector<8x1xf32>
    %10 = arith.mulf %8, %9 : vector<8x1xf32>
    %11 = arith.mulf %6, %6 : vector<8x128xf32>
    %cst_7 = arith.constant dense<0.000000e+00> : vector<8xf32>
    %12 = vector.multi_reduction <add>, %11, %cst_7 [1] : vector<8x128xf32> to vector<8xf32>
    %13 = vector.shape_cast %12 : vector<8xf32> to vector<8x1xf32>
    %cst_8 = arith.constant 1.562500e-02 : f32
    %14 = vector.broadcast %cst_8 : f32 to vector<8x1xf32>
    %15 = arith.mulf %13, %14 : vector<8x1xf32>
    %16 = arith.mulf %10, %10 : vector<8x1xf32>
    %17 = arith.subf %15, %16 : vector<8x1xf32>
    %cst_9 = arith.constant 0.000000e+00 : f32
    %18 = vector.broadcast %cst_9 : f32 to vector<8x1xf32>
    %19 = arith.maximumf %17, %18 : vector<8x1xf32>
    %20 = vector.broadcast %10 : vector<8x1xf32> to vector<8x128xf32>
    %21 = arith.subf %6, %20 : vector<8x128xf32>
    %cst_10 = arith.constant 9.99999974E-6 : f32
    %22 = vector.broadcast %cst_10 : f32 to vector<8x1xf32>
    %23 = arith.addf %19, %22 : vector<8x1xf32>
    %24 = math.rsqrt %23 : vector<8x1xf32>
    %25 = vector.broadcast %24 : vector<8x1xf32> to vector<8x128xf32>
    %26 = arith.mulf %21, %25 : vector<8x128xf32>
    %c1 = arith.constant 1 : index
    %c0_11 = arith.constant 0 : index
    %27 = vector.load %arg3[%c1, %c0_11] : memref<3x128xf32, #tpu.memory_space<vmem>>, vector<1x128xf32>
    %28 = vector.broadcast %27 : vector<1x128xf32> to vector<8x128xf32>
    %29 = arith.mulf %26, %28 : vector<8x128xf32>
    %c2 = arith.constant 2 : index
    %c0_12 = arith.constant 0 : index
    %30 = vector.load %arg3[%c2, %c0_12] : memref<3x128xf32, #tpu.memory_space<vmem>>, vector<1x128xf32>
    %31 = vector.broadcast %30 : vector<1x128xf32> to vector<8x128xf32>
    %32 = arith.addf %29, %31 : vector<8x128xf32>
    %cst_13 = arith.constant 0.000000e+00 : f32
    %33 = vector.broadcast %cst_13 : f32 to vector<8x128xf32>
    %34 = arith.maximumf %32, %33 : vector<8x128xf32>
    %35 = arith.truncf %34 : vector<8x128xf32> to vector<8x128xbf16>
    %c0_14 = arith.constant 0 : index
    %c0_15 = arith.constant 0 : index
    %36 = vector.load %arg4[%c0_14, %c0_15] : memref<128x128xbf16, #tpu.memory_space<vmem>>, vector<128x128xbf16>
    %cst_16 = arith.constant dense<0.000000e+00> : vector<8x128xf32>
    %37 = tpu.matmul %35, %36, %cst_16 {dimension_numbers = #tpu.dot_dimension_numbers<[1], [0], [0], [1], [0, 0, 1, 1], [], []>} : vector<8x128xbf16>, vector<128x128xbf16>, vector<8x128xf32> -> vector<8x128xf32>
    %c0_17 = arith.constant 0 : index
    %c0_18 = arith.constant 0 : index
    %38 = vector.load %arg5[%c0_17, %c0_18] : memref<3x128xf32, #tpu.memory_space<vmem>>, vector<1x128xf32>
    %39 = vector.broadcast %38 : vector<1x128xf32> to vector<8x128xf32>
    %40 = arith.addf %37, %39 : vector<8x128xf32>
    %cst_19 = arith.constant dense<0.000000e+00> : vector<8xf32>
    %41 = vector.multi_reduction <add>, %40, %cst_19 [1] : vector<8x128xf32> to vector<8xf32>
    %42 = vector.shape_cast %41 : vector<8xf32> to vector<8x1xf32>
    %cst_20 = arith.constant 3.125000e-02 : f32
    %43 = vector.broadcast %cst_20 : f32 to vector<8x1xf32>
    %44 = arith.mulf %42, %43 : vector<8x1xf32>
    %45 = arith.mulf %40, %40 : vector<8x128xf32>
    %cst_21 = arith.constant dense<0.000000e+00> : vector<8xf32>
    %46 = vector.multi_reduction <add>, %45, %cst_21 [1] : vector<8x128xf32> to vector<8xf32>
    %47 = vector.shape_cast %46 : vector<8xf32> to vector<8x1xf32>
    %cst_22 = arith.constant 3.125000e-02 : f32
    %48 = vector.broadcast %cst_22 : f32 to vector<8x1xf32>
    %49 = arith.mulf %47, %48 : vector<8x1xf32>
    %50 = arith.mulf %44, %44 : vector<8x1xf32>
    %51 = arith.subf %49, %50 : vector<8x1xf32>
    %cst_23 = arith.constant 0.000000e+00 : f32
    %52 = vector.broadcast %cst_23 : f32 to vector<8x1xf32>
    %53 = arith.maximumf %51, %52 : vector<8x1xf32>
    %54 = vector.broadcast %44 : vector<8x1xf32> to vector<8x128xf32>
    %55 = arith.subf %40, %54 : vector<8x128xf32>
    %cst_24 = arith.constant 9.99999974E-6 : f32
    %56 = vector.broadcast %cst_24 : f32 to vector<8x1xf32>
    %57 = arith.addf %53, %56 : vector<8x1xf32>
    %58 = math.rsqrt %57 : vector<8x1xf32>
    %59 = vector.broadcast %58 : vector<8x1xf32> to vector<8x128xf32>
    %60 = arith.mulf %55, %59 : vector<8x128xf32>
    %c1_25 = arith.constant 1 : index
    %c0_26 = arith.constant 0 : index
    %61 = vector.load %arg5[%c1_25, %c0_26] : memref<3x128xf32, #tpu.memory_space<vmem>>, vector<1x128xf32>
    %62 = vector.broadcast %61 : vector<1x128xf32> to vector<8x128xf32>
    %63 = arith.mulf %60, %62 : vector<8x128xf32>
    %c2_27 = arith.constant 2 : index
    %c0_28 = arith.constant 0 : index
    %64 = vector.load %arg5[%c2_27, %c0_28] : memref<3x128xf32, #tpu.memory_space<vmem>>, vector<1x128xf32>
    %65 = vector.broadcast %64 : vector<1x128xf32> to vector<8x128xf32>
    %66 = arith.addf %63, %65 : vector<8x128xf32>
    %cst_29 = arith.constant 0.000000e+00 : f32
    %67 = vector.broadcast %cst_29 : f32 to vector<8x128xf32>
    %68 = arith.maximumf %66, %67 : vector<8x128xf32>
    %69 = arith.truncf %68 : vector<8x128xf32> to vector<8x128xbf16>
    %c0_30 = arith.constant 0 : index
    %c0_31 = arith.constant 0 : index
    %70 = vector.load %arg6[%c0_30, %c0_31] : memref<128x128xbf16, #tpu.memory_space<vmem>>, vector<128x128xbf16>
    %cst_32 = arith.constant dense<0.000000e+00> : vector<8x128xf32>
    %71 = tpu.matmul %69, %70, %cst_32 {dimension_numbers = #tpu.dot_dimension_numbers<[1], [0], [0], [1], [0, 0, 1, 1], [], []>} : vector<8x128xbf16>, vector<128x128xbf16>, vector<8x128xf32> -> vector<8x128xf32>
    %c0_33 = arith.constant 0 : index
    %c0_34 = arith.constant 0 : index
    %72 = vector.load %arg7[%c0_33, %c0_34] : memref<1x128xf32, #tpu.memory_space<vmem>>, vector<1x128xf32>
    %73 = vector.broadcast %72 : vector<1x128xf32> to vector<8x128xf32>
    %74 = arith.addf %71, %73 : vector<8x128xf32>
    %c0_35 = arith.constant 0 : index
    %c0_36 = arith.constant 0 : index
    %75 = vector.load %arg8[%c0_35, %c0_36] : memref<8x128xf32, #tpu.memory_space<vmem>>, vector<8x128xf32>
    tpu.vector_store %arg8[%c0_35, %c0_36], %74 {strides = array<i32>} : memref<8x128xf32, #tpu.memory_space<vmem>>, vector<8x128xf32>,
    return
  }
  func.func @transform_0(%arg0: i32) -> (i32, i32) {
    %c0_i32 = arith.constant 0 : i32
    %c0_i32_0 = arith.constant 0 : i32
    return %arg0, %c0_i32 : i32, i32
  }
  func.func @transform_1(%arg0: i32) -> (i32, i32) {
    %c0_i32 = arith.constant 0 : i32
    %c0_i32_0 = arith.constant 0 : i32
    %c0_i32_1 = arith.constant 0 : i32
    return %c0_i32, %c0_i32_0 : i32, i32
  }
  func.func @transform_2(%arg0: i32) -> (i32, i32) {
    %c0_i32 = arith.constant 0 : i32
    %c0_i32_0 = arith.constant 0 : i32
    %c0_i32_1 = arith.constant 0 : i32
    return %c0_i32, %c0_i32_0 : i32, i32
  }
  func.func @transform_3(%arg0: i32) -> (i32, i32) {
    %c0_i32 = arith.constant 0 : i32
    %c0_i32_0 = arith.constant 0 : i32
    %c0_i32_1 = arith.constant 0 : i32
    return %c0_i32, %c0_i32_0 : i32, i32
  }
  func.func @transform_4(%arg0: i32) -> (i32, i32) {
    %c0_i32 = arith.constant 0 : i32
    %c0_i32_0 = arith.constant 0 : i32
    %c0_i32_1 = arith.constant 0 : i32
    return %c0_i32, %c0_i32_0 : i32, i32
  }
  func.func @transform_5(%arg0: i32) -> (i32, i32) {
    %c0_i32 = arith.constant 0 : i32
    %c0_i32_0 = arith.constant 0 : i32
    %c0_i32_1 = arith.constant 0 : i32
    return %c0_i32, %c0_i32_0 : i32, i32
  }
  func.func @transform_6(%arg0: i32) -> (i32, i32) {
    %c0_i32 = arith.constant 0 : i32
    %c0_i32_0 = arith.constant 0 : i32
    %c0_i32_1 = arith.constant 0 : i32
    return %c0_i32, %c0_i32_0 : i32, i32
  }
  func.func @transform_7(%arg0: i32) -> (i32, i32) {
    %c0_i32 = arith.constant 0 : i32
    %c0_i32_0 = arith.constant 0 : i32
    return %arg0, %c0_i32 : i32, i32
  }
}

</mosaic_0001>

<llo_original>
// kernel: tpu_custom_call.1
$region0: #{tpu_custom_call.1}
  #allocation0 [shape = 'u32[]', space=smem, size = 0x4, offset = 0x4, fixed_abs, tag = 'smem constant byte address 0x4 - core index']
  #allocation1 [shape = 'u32[72,128]{1,0:T(1,128)}', space=vmem, size = 0x9000, scoped, tag = 'internal scratch']
  %s0 = inlined_call_operand.hbm [shape: f32[8,128], index: 0, kind: input, shape index: {}]
  %s1 = inlined_call_operand.hbm [shape: bf16[128,128], index: 1, kind: input, shape index: {}]
  %s2 = inlined_call_operand.hbm [shape: f32[3,128], index: 2, kind: input, shape index: {}]
  %s3 = inlined_call_operand.hbm [shape: bf16[128,128], index: 3, kind: input, shape index: {}]
  %s4 = inlined_call_operand.hbm [shape: f32[3,128], index: 4, kind: input, shape index: {}]
  %s5 = inlined_call_operand.hbm [shape: bf16[128,128], index: 5, kind: input, shape index: {}]
  %s6 = inlined_call_operand.vmem [shape: f32[1,128], index: 6, kind: input, shape index: {}]
  %s7 = inlined_call_operand.hbm [shape: f32[8,128], index: 7, kind: output, shape index: {}]
  %s8 = sld [smem:[#allocation0]]
  $region62: #{tpu_custom_call.1} parent=0
    _
  %s10 = ssub.s32 1, %s8
  %s11 = scalar_select 0, %s10, %s8
  $region1: #{tpu_custom_call.1} parent=0
    #allocation2 [shape = 'u8[4096]{0}', space=vmem, size = 0x1000, scoped, tag = 'input window, operand 0, single buffered']
    #allocation3 [shape = 's32[1]{0}', space=sflag, size = 0x4, scoped, tag = 'scoped memory for tpu_custom_call.1']
    #allocation4 [shape = 's32[1]{0}', space=sflag, size = 0x4, scoped, tag = 'scoped memory for tpu_custom_call.1']
    #allocation5 [shape = 'u8[32768]{0}', space=vmem, size = 0x8000, scoped, tag = 'input window, operand 1, single buffered']
    #allocation6 [shape = 's32[1]{0}', space=sflag, size = 0x4, scoped, tag = 'scoped memory for tpu_custom_call.1']
    #allocation7 [shape = 'u8[2048]{0}', space=vmem, size = 0x800, scoped, tag = 'input window, operand 2, single buffered']
    #allocation8 [shape = 'u8[32768]{0}', space=vmem, size = 0x8000, scoped, tag = 'input window, operand 3, single buffered']
    #allocation9 [shape = 's32[1]{0}', space=sflag, size = 0x4, scoped, tag = 'scoped memory for tpu_custom_call.1']
    #allocation10 [shape = 'u8[2048]{0}', space=vmem, size = 0x800, scoped, tag = 'input window, operand 4, single buffered']
    #allocation11 [shape = 'u8[32768]{0}', space=vmem, size = 0x8000, scoped, tag = 'input window, operand 5, single buffered']
    #allocation12 [shape = 's32[1]{0}', space=sflag, size = 0x4, scoped, tag = 'scoped memory for tpu_custom_call.1']
    #allocation13 [shape = 'u8[4096]{0}', space=vmem, size = 0x1000, scoped, tag = 'output window, operand 0, single buffered']
    %12 = vsyncpa [#allocation3], 0
    %13 = vsyncpa [#allocation6], 0
    %14 = vsyncpa [#allocation9], 0
    %15 = vsyncpa [#allocation12], 0
    %16 = vsyncpa [#allocation4], 0
    // Predicated region
    $region2: #{tpu_custom_call.1} parent=1 // pred_check
      _
    $region3: #{tpu_custom_call.1} parent=1 // pred_check_branch
      %18 = sbr.rel (0) target = $region5
    $region4: #{tpu_custom_call.1} parent=1 // pred_region
      %20 = vsyncadd [#allocation3], 0
      %s22 = sshll.u32 %s0, 4
      %s23 = int_to_ptr.hbm [resolvable:$true] %s22
      %s24 = sshll.u32 [#allocation2], 4
      %s25 = int_to_ptr.vmem [resolvable:$true] %s24
      %27 = dma.hbm_to_vmem [thread:$0]  %s23, 128, %s25, [#allocation3]
    $region5: #{tpu_custom_call.1} parent=1 // pred_fallthru
      _
    // Predicated region
    $region6: #{tpu_custom_call.1} parent=1 // pred_check
      _
    $region7: #{tpu_custom_call.1} parent=1 // pred_check_branch
      %29 = sbr.rel (0) target = $region9
    $region8: #{tpu_custom_call.1} parent=1 // pred_region
      %31 = vsyncadd [#allocation6], 0
      %s32 = sshll.u32 %s1, 4
      %s33 = int_to_ptr.hbm [resolvable:$true] %s32
      %s34 = sshll.u32 [#allocation5], 4
      %s35 = int_to_ptr.vmem [resolvable:$true] %s34
      %40 = dma.hbm_to_vmem [thread:$0]  %s33, 1024, %s35, [#allocation6], 64, 64, 4
    $region9: #{tpu_custom_call.1} parent=1 // pred_fallthru
      _
    // Predicated region
    $region10: #{tpu_custom_call.1} parent=1 // pred_check
      _
    $region11: #{tpu_custom_call.1} parent=1 // pred_check_branch
      %42 = sbr.rel (0) target = $region13
    $region12: #{tpu_custom_call.1} parent=1 // pred_region
      %44 = vsyncadd [#allocation6], 0
      %s46 = sshll.u32 %s2, 4
      %s47 = int_to_ptr.hbm [resolvable:$true] %s46
      %s48 = sshll.u32 [#allocation7], 4
      %s49 = int_to_ptr.vmem [resolvable:$true] %s48
      %51 = dma.hbm_to_vmem [thread:$0]  %s47, 64, %s49, [#allocation6]
    $region13: #{tpu_custom_call.1} parent=1 // pred_fallthru
      _
    // Predicated region
    $region14: #{tpu_custom_call.1} parent=1 // pred_check
      _
    $region15: #{tpu_custom_call.1} parent=1 // pred_check_branch
      %53 = sbr.rel (0) target = $region17
    $region16: #{tpu_custom_call.1} parent=1 // pred_region
      %55 = vsyncadd [#allocation9], 0
      %s56 = sshll.u32 %s3, 4
      %s57 = int_to_ptr.hbm [resolvable:$true] %s56
      %s58 = sshll.u32 [#allocation8], 4
      %s59 = int_to_ptr.vmem [resolvable:$true] %s58
      %64 = dma.hbm_to_vmem [thread:$0]  %s57, 1024, %s59, [#allocation9], 64, 64, 4
    $region17: #{tpu_custom_call.1} parent=1 // pred_fallthru
      _
    // Predicated region
    $region18: #{tpu_custom_call.1} parent=1 // pred_check
      _
    $region19: #{tpu_custom_call.1} parent=1 // pred_check_branch
      %66 = sbr.rel (0) target = $region21
    $region20: #{tpu_custom_call.1} parent=1 // pred_region
      %68 = vsyncadd [#allocation9], 0
      %s70 = sshll.u32 %s4, 4
      %s71 = int_to_ptr.hbm [resolvable:$true] %s70
      %s72 = sshll.u32 [#allocation10], 4
      %s73 = int_to_ptr.vmem [resolvable:$true] %s72
      %75 = dma.hbm_to_vmem [thread:$0]  %s71, 64, %s73, [#allocation9]
    $region21: #{tpu_custom_call.1} parent=1 // pred_fallthru
      _
    // Predicated region
    $region22: #{tpu_custom_call.1} parent=1 // pred_check
      _
    $region23: #{tpu_custom_call.1} parent=1 // pred_check_branch
      %77 = sbr.rel (0) target = $region25
    $region24: #{tpu_custom_call.1} parent=1 // pred_region
      %79 = vsyncadd [#allocation12], 0
      %s80 = sshll.u32 %s5, 4
      %s81 = int_to_ptr.hbm [resolvable:$true] %s80
      %s82 = sshll.u32 [#allocation11], 4
      %s83 = int_to_ptr.vmem [resolvable:$true] %s82
      %88 = dma.hbm_to_vmem [thread:$0]  %s81, 1024, %s83, [#allocation12], 64, 64, 4
    $region25: #{tpu_custom_call.1} parent=1 // pred_fallthru
      _
    // Predicated region
    $region26: #{tpu_custom_call.1} parent=1 // pred_check
      _
    $region27: #{tpu_custom_call.1} parent=1 // pred_check_branch
      %90 = sbr.rel (0) target = $region29
    $region28: #{tpu_custom_call.1} parent=1 // pred_region
      _
    $region29: #{tpu_custom_call.1} parent=1 // pred_fallthru
      _
    // Predicated region
    $region30: #{tpu_custom_call.1} parent=1 // pred_check
      _
    $region31: #{tpu_custom_call.1} parent=1 // pred_check_branch
      %92 = sbr.rel (0) target = $region33
    $region32: #{tpu_custom_call.1} parent=1 // pred_region
      %94 = dma.done [#allocation3], 128
    $region33: #{tpu_custom_call.1} parent=1 // pred_fallthru
      _
    // Predicated region
    $region34: #{tpu_custom_call.1} parent=1 // pred_check
      _
    $region35: #{tpu_custom_call.1} parent=1 // pred_check_branch
      %96 = sbr.rel (0) target = $region37
    $region36: #{tpu_custom_call.1} parent=1 // pred_region
      %98 = dma.done [#allocation6], 1024
    $region37: #{tpu_custom_call.1} parent=1 // pred_fallthru
      _
    // Predicated region
    $region38: #{tpu_custom_call.1} parent=1 // pred_check
      _
    $region39: #{tpu_custom_call.1} parent=1 // pred_check_branch
      %100 = sbr.rel (0) target = $region41
    $region40: #{tpu_custom_call.1} parent=1 // pred_region
      %102 = dma.done [#allocation6], 64
    $region41: #{tpu_custom_call.1} parent=1 // pred_fallthru
      _
    // Predicated region
    $region42: #{tpu_custom_call.1} parent=1 // pred_check
      _
    $region43: #{tpu_custom_call.1} parent=1 // pred_check_branch
      %104 = sbr.rel (0) target = $region45
    $region44: #{tpu_custom_call.1} parent=1 // pred_region
      %106 = dma.done [#allocation9], 1024
    $region45: #{tpu_custom_call.1} parent=1 // pred_fallthru
      _
    // Predicated region
    $region46: #{tpu_custom_call.1} parent=1 // pred_check
      _
    $region47: #{tpu_custom_call.1} parent=1 // pred_check_branch
      %108 = sbr.rel (0) target = $region49
    $region48: #{tpu_custom_call.1} parent=1 // pred_region
      %110 = dma.done [#allocation9], 64
    $region49: #{tpu_custom_call.1} parent=1 // pred_fallthru
      _
    // Predicated region
    $region50: #{tpu_custom_call.1} parent=1 // pred_check
      _
    $region51: #{tpu_custom_call.1} parent=1 // pred_check_branch
      %112 = sbr.rel (0) target = $region53
    $region52: #{tpu_custom_call.1} parent=1 // pred_region
      %114 = dma.done [#allocation12], 1024
    $region53: #{tpu_custom_call.1} parent=1 // pred_fallthru
      _
    %v115 = vld [vmem:[#allocation2] sm:$0xff]
    %v116 = vpack.c.bf16 %v115, %v115
    %v117 = vld [vmem:[#allocation5] sm:$0xf]
    %v118 = vld [vmem:[#allocation5 + $0x4] sm:$0xf]
    %v119 = vld [vmem:[#allocation5 + $0x8] sm:$0xf]
    %v120 = vld [vmem:[#allocation5 + $0xc] sm:$0xf]
    %v121 = vld [vmem:[#allocation5 + $0x10] sm:$0xf]
    %v122 = vld [vmem:[#allocation5 + $0x14] sm:$0xf]
    %v123 = vld [vmem:[#allocation5 + $0x18] sm:$0xf]
    %v124 = vld [vmem:[#allocation5 + $0x1c] sm:$0xf]
    %v125 = vld [vmem:[#allocation5 + $0x20] sm:$0xf]
    %v126 = vld [vmem:[#allocation5 + $0x24] sm:$0xf]
    %v127 = vld [vmem:[#allocation5 + $0x28] sm:$0xf]
    %v128 = vld [vmem:[#allocation5 + $0x2c] sm:$0xf]
    %v129 = vld [vmem:[#allocation5 + $0x30] sm:$0xf]
    %v130 = vld [vmem:[#allocation5 + $0x34] sm:$0xf]
    %v131 = vld [vmem:[#allocation5 + $0x38] sm:$0xf]
    %v132 = vld [vmem:[#allocation5 + $0x3c] sm:$0xf]
    %v133 = vld [vmem:[#allocation7] sm:$0x1]
    %v134 = vperm.slane %v133, 0
    %v151 = vunpack.c.l.b16 %v117
    %v152 = vunpack.c.l.b16 %v118
    %v153 = vunpack.c.l.b16 %v119
    %v154 = vunpack.c.l.b16 %v120
    %v155 = vunpack.c.l.b16 %v121
    %v156 = vunpack.c.l.b16 %v122
    %v157 = vunpack.c.l.b16 %v123
    %v158 = vunpack.c.l.b16 %v124
    %v159 = vunpack.c.l.b16 %v125
    %v160 = vunpack.c.l.b16 %v126
    %v161 = vunpack.c.l.b16 %v127
    %v162 = vunpack.c.l.b16 %v128
    %v163 = vunpack.c.l.b16 %v129
    %v164 = vunpack.c.l.b16 %v130
    %v165 = vunpack.c.l.b16 %v131
    %v166 = vunpack.c.l.b16 %v132
    %v167 = vpack.c.b16 %v152, %v151
    %v168 = vpack.c.b16 %v154, %v153
    %v169 = vpack.c.b16 %v156, %v155
    %v170 = vpack.c.b16 %v158, %v157
    %v171 = vpack.c.b16 %v160, %v159
    %v172 = vpack.c.b16 %v162, %v161
    %v173 = vpack.c.b16 %v164, %v163
    %v174 = vpack.c.b16 %v166, %v165
    %183 = vmatpush.bf16.msra.mxu0 %v174
    %184 = vmatpush.bf16.msra.mxu0 %v173
    %185 = vmatpush.bf16.msra.mxu0 %v172
    %186 = vmatpush.bf16.msra.mxu0 %v171
    %187 = vmatpush.bf16.msra.mxu0 %v170
    %188 = vmatpush.bf16.msra.mxu0 %v169
    %189 = vmatpush.bf16.msra.mxu0 %v168
    %190 = vmatpush.bf16.msra.mxu0 %v167
    %191 = vmatmul.bf16.gmra.mxu0 %v116
    %v192 = vpop.f32.mrf.mxu0
    %v193 = vadd.f32 %v134, %v192
    %v194 = vpop.f32.mrf.mxu0
    %195 = vdwg.mxu0
    %196 = vadd.xlane.f32.xlu0 %v193
    %v197 = vpop.xlane.xlu0 %196
    %v198 = vmul.f32 %v197, 0.015625
    %v199 = vmul.f32 %v193, %v193
    %200 = vadd.xlane.f32.xlu0 %v199
    %v201 = vpop.xlane.xlu0 %200
    %v202 = vmul.f32 %v201, 0.015625
    %v203 = vmul.f32 %v198, %v198
    %v204 = vsub.f32 %v202, %v203
    %v205 = vmax.f32 %v204, 0.0
    %v206 = vsub.f32 %v193, %v198
    %v207 = vadd.f32 %v205, 1e-05
    %v208 = vrsqrt.pop %v207
    %v209 = vmul.f32 %v208, %v207
    %v210 = vmul.f32 %v209, %v208
    %v211 = vmul.f32 0.5, %v210
    %v212 = vsub.f32 1.5, %v211
    %v213 = vmul.f32 %v208, %v212
    %vm214 = vweird.f32 %v207
    %vm215 = vweird.f32 %v208
    %vm216 = vmor %vm214, %vm215
    %v217 = vsel %vm216, %v208, %v213
    %v218 = vmul.f32 %v206, %v217
    %v219 = vld [vmem:[#allocation7 + $0x1] sm:$0x1]
    %v220 = vperm.slane %v219, 0
    %v221 = vmul.f32 %v218, %v220
    %v222 = vld [vmem:[#allocation7 + $0x2] sm:$0x1]
    %v223 = vperm.slane %v222, 0
    %v224 = vadd.f32 %v221, %v223
    %v225 = vmax.f32 %v224, 0.0
    %v226 = vpack.c.bf16 %v225, %v225
    %v227 = vld [vmem:[#allocation8] sm:$0xf]
    %v228 = vld [vmem:[#allocation8 + $0x4] sm:$0xf]
    %v229 = vld [vmem:[#allocation8 + $0x8] sm:$0xf]
    %v230 = vld [vmem:[#allocation8 + $0xc] sm:$0xf]
    %v231 = vld [vmem:[#allocation8 + $0x10] sm:$0xf]
    %v232 = vld [vmem:[#allocation8 + $0x14] sm:$0xf]
    %v233 = vld [vmem:[#allocation8 + $0x18] sm:$0xf]
    %v234 = vld [vmem:[#allocation8 + $0x1c] sm:$0xf]
    %v235 = vld [vmem:[#allocation8 + $0x20] sm:$0xf]
    %v236 = vld [vmem:[#allocation8 + $0x24] sm:$0xf]
    %v237 = vld [vmem:[#allocation8 + $0x28] sm:$0xf]
    %v238 = vld [vmem:[#allocation8 + $0x2c] sm:$0xf]
    %v239 = vld [vmem:[#allocation8 + $0x30] sm:$0xf]
    %v240 = vld [vmem:[#allocation8 + $0x34] sm:$0xf]
    %v241 = vld [vmem:[#allocation8 + $0x38] sm:$0xf]
    %v242 = vld [vmem:[#allocation8 + $0x3c] sm:$0xf]
    %v243 = vld [vmem:[#allocation10] sm:$0x1]
    %v244 = vperm.slane %v243, 0
    %v261 = vunpack.c.l.b16 %v227
    %v262 = vunpack.c.l.b16 %v228
    %v263 = vunpack.c.l.b16 %v229
    %v264 = vunpack.c.l.b16 %v230
    %v265 = vunpack.c.l.b16 %v231
    %v266 = vunpack.c.l.b16 %v232
    %v267 = vunpack.c.l.b16 %v233
    %v268 = vunpack.c.l.b16 %v234
    %v269 = vunpack.c.l.b16 %v235
    %v270 = vunpack.c.l.b16 %v236
    %v271 = vunpack.c.l.b16 %v237
    %v272 = vunpack.c.l.b16 %v238
    %v273 = vunpack.c.l.b16 %v239
    %v274 = vunpack.c.l.b16 %v240
    %v275 = vunpack.c.l.b16 %v241
    %v276 = vunpack.c.l.b16 %v242
    %v277 = vpack.c.b16 %v262, %v261
    %v278 = vpack.c.b16 %v264, %v263
    %v279 = vpack.c.b16 %v266, %v265
    %v280 = vpack.c.b16 %v268, %v267
    %v281 = vpack.c.b16 %v270, %v269
    %v282 = vpack.c.b16 %v272, %v271
    %v283 = vpack.c.b16 %v274, %v273
    %v284 = vpack.c.b16 %v276, %v275
    %293 = vmatpush.bf16.msra.mxu0 %v284
    %294 = vmatpush.bf16.msra.mxu0 %v283
    %295 = vmatpush.bf16.msra.mxu0 %v282
    %296 = vmatpush.bf16.msra.mxu0 %v281
    %297 = vmatpush.bf16.msra.mxu0 %v280
    %298 = vmatpush.bf16.msra.mxu0 %v279
    %299 = vmatpush.bf16.msra.mxu0 %v278
    %300 = vmatpush.bf16.msra.mxu0 %v277
    %301 = vmatmul.bf16.gmra.mxu0 %v226
    %v302 = vpop.f32.mrf.mxu0
    %v303 = vadd.f32 %v244, %v302
    %v304 = vpop.f32.mrf.mxu0
    %305 = vdwg.mxu0
    %306 = vadd.xlane.f32.xlu0 %v303
    %v307 = vpop.xlane.xlu0 %306
    %v308 = vmul.f32 %v307, 0.03125
    %v309 = vmul.f32 %v303, %v303
    %310 = vadd.xlane.f32.xlu0 %v309
    %v311 = vpop.xlane.xlu0 %310
    %v312 = vmul.f32 %v311, 0.03125
    %v313 = vmul.f32 %v308, %v308
    %v314 = vsub.f32 %v312, %v313
    %v315 = vmax.f32 %v314, 0.0
    %v316 = vsub.f32 %v303, %v308
    %v317 = vadd.f32 %v315, 1e-05
    %v318 = vrsqrt.pop %v317
    %v319 = vmul.f32 %v318, %v317
    %v320 = vmul.f32 %v319, %v318
    %v321 = vmul.f32 0.5, %v320
    %v322 = vsub.f32 1.5, %v321
    %v323 = vmul.f32 %v318, %v322
    %vm324 = vweird.f32 %v317
    %vm325 = vweird.f32 %v318
    %vm326 = vmor %vm324, %vm325
    %v327 = vsel %vm326, %v318, %v323
    %v328 = vmul.f32 %v316, %v327
    %v329 = vld [vmem:[#allocation10 + $0x1] sm:$0x1]
    %v330 = vperm.slane %v329, 0
    %v331 = vmul.f32 %v328, %v330
    %v332 = vld [vmem:[#allocation10 + $0x2] sm:$0x1]
    %v333 = vperm.slane %v332, 0
    %v334 = vadd.f32 %v331, %v333
    %v335 = vmax.f32 %v334, 0.0
    %v336 = vpack.c.bf16 %v335, %v335
    %v337 = vld [vmem:[#allocation11] sm:$0xf]
    %v338 = vld [vmem:[#allocation11 + $0x4] sm:$0xf]
    %v339 = vld [vmem:[#allocation11 + $0x8] sm:$0xf]
    %v340 = vld [vmem:[#allocation11 + $0xc] sm:$0xf]
    %v341 = vld [vmem:[#allocation11 + $0x10] sm:$0xf]
    %v342 = vld [vmem:[#allocation11 + $0x14] sm:$0xf]
    %v343 = vld [vmem:[#allocation11 + $0x18] sm:$0xf]
    %v344 = vld [vmem:[#allocation11 + $0x1c] sm:$0xf]
    %v345 = vld [vmem:[#allocation11 + $0x20] sm:$0xf]
    %v346 = vld [vmem:[#allocation11 + $0x24] sm:$0xf]
    %v347 = vld [vmem:[#allocation11 + $0x28] sm:$0xf]
    %v348 = vld [vmem:[#allocation11 + $0x2c] sm:$0xf]
    %v349 = vld [vmem:[#allocation11 + $0x30] sm:$0xf]
    %v350 = vld [vmem:[#allocation11 + $0x34] sm:$0xf]
    %v351 = vld [vmem:[#allocation11 + $0x38] sm:$0xf]
    %v352 = vld [vmem:[#allocation11 + $0x3c] sm:$0xf]
    %v353 = vld [vmem:[%s6] sm:$0x1]
    %v355 = vperm.slane %v353, 0
    %v373 = vunpack.c.l.b16 %v337
    %v374 = vunpack.c.l.b16 %v338
    %v375 = vunpack.c.l.b16 %v339
    %v376 = vunpack.c.l.b16 %v340
    %v377 = vunpack.c.l.b16 %v341
    %v378 = vunpack.c.l.b16 %v342
    %v379 = vunpack.c.l.b16 %v343
    %v380 = vunpack.c.l.b16 %v344
    %v381 = vunpack.c.l.b16 %v345
    %v382 = vunpack.c.l.b16 %v346
    %v383 = vunpack.c.l.b16 %v347
    %v384 = vunpack.c.l.b16 %v348
    %v385 = vunpack.c.l.b16 %v349
    %v386 = vunpack.c.l.b16 %v350
    %v387 = vunpack.c.l.b16 %v351
    %v388 = vunpack.c.l.b16 %v352
    %v389 = vpack.c.b16 %v374, %v373
    %v390 = vpack.c.b16 %v376, %v375
    %v391 = vpack.c.b16 %v378, %v377
    %v392 = vpack.c.b16 %v380, %v379
    %v393 = vpack.c.b16 %v382, %v381
    %v394 = vpack.c.b16 %v384, %v383
    %v395 = vpack.c.b16 %v386, %v385
    %v396 = vpack.c.b16 %v388, %v387
    %405 = vmatpush.bf16.msra.mxu0 %v396
    %406 = vmatpush.bf16.msra.mxu0 %v395
    %407 = vmatpush.bf16.msra.mxu0 %v394
    %408 = vmatpush.bf16.msra.mxu0 %v393
    %409 = vmatpush.bf16.msra.mxu0 %v392
    %410 = vmatpush.bf16.msra.mxu0 %v391
    %411 = vmatpush.bf16.msra.mxu0 %v390
    %412 = vmatpush.bf16.msra.mxu0 %v389
    %413 = vmatmul.bf16.gmra.mxu0 %v336
    %v414 = vpop.f32.mrf.mxu0
    %v415 = vadd.f32 %v355, %v414
    %v416 = vpop.f32.mrf.mxu0
    %417 = vdwg.mxu0
    %418 = vst [vmem:[#allocation13] sm:$0xff] %v415
    // Predicated region
    $region54: #{tpu_custom_call.1} parent=1 // pred_check
      _
    $region55: #{tpu_custom_call.1} parent=1 // pred_check_branch
      %420 = sbr.rel (0) target = $region57
    $region56: #{tpu_custom_call.1} parent=1 // pred_region
      %422 = vsyncadd [#allocation4], 0
      %s424 = sshll.u32 [#allocation13], 4
      %s425 = int_to_ptr.vmem [resolvable:$true] %s424
      %s426 = sshll.u32 %s7, 4
      %s427 = int_to_ptr.hbm [resolvable:$true] %s426
      %429 = dma.vmem_to_hbm [thread:$0]  %s425, 128, %s427, [#allocation4]
    $region57: #{tpu_custom_call.1} parent=1 // pred_fallthru
      _
    // Predicated region
    $region58: #{tpu_custom_call.1} parent=1 // pred_check
      _
    $region59: #{tpu_custom_call.1} parent=1 // pred_check_branch
      %431 = sbr.rel (0) target = $region61
    $region60: #{tpu_custom_call.1} parent=1 // pred_region
      %433 = dma.done [#allocation4], 128
    $region61: #{tpu_custom_call.1} parent=1 // pred_fallthru
      _
    %434 = vsyncpa [#allocation3], 1
    %435 = vsyncpa [#allocation6], 1
    %436 = vsyncpa [#allocation9], 1
    %437 = vsyncpa [#allocation12], 1
    %438 = vsyncpa [#allocation4], 1

</llo_original>
